<compile_context>
chip_gen: v7x
topology: tpu7x:2x2x1
jax: 0.10.0
libtpu: 0.0.40
codegen_flags: <defaults>
</compile_context>

<pallas_src>
import functools
import math

import jax
import jax.numpy as jnp
from jax.experimental import pallas as pl
from jax.experimental.pallas import tpu as pltpu

_INV_SQRT2 = 1.0 / math.sqrt(2.0)


def _mlm_head_kernel(x_ref, w1_ref, b1_ref, g_ref, beta_ref, w2_ref, db_ref,
                     o_ref, hn_ref, *, eps, mm_precision):
    """Grid = (row block i [parallel], vocab tile j [arbitrary, innermost])."""
    j = pl.program_id(1)

    # dense + exact GELU + LayerNorm: compute once per row block, reuse the
    # VMEM scratch `hn_ref` for every vocab tile of this row block.
    @pl.when(j == 0)
    def _():
        x = x_ref[...].astype(w1_ref.dtype)                     # MXU operand dtype
        h = jnp.dot(x, w1_ref[...],
                    preferred_element_type=jnp.float32,
                    precision=mm_precision)                      # (tm, H) f32
        h = h + b1_ref[...]
        # Exact GELU (torch erf form). erf/rsqrt land on VPU/EUP and are cheap
        # relative to the MXU work; keep exact semantics (no tanh approx).
        h = 0.5 * h * (1.0 + jax.lax.erf(h * _INV_SQRT2))
        # LayerNorm over hidden dim (biased variance, like torch), in f32.
        mu = jnp.mean(h, axis=-1, keepdims=True)
        hc = h - mu
        var = jnp.mean(hc * hc, axis=-1, keepdims=True)
        hn = hc * jax.lax.rsqrt(var + eps)
        hn = hn * g_ref[...] + beta_ref[...]
        hn_ref[...] = hn.astype(hn_ref.dtype)                   # store in compute dtype

    # decoder: Linear(H, V, bias=False) + bias, one (H, tn) vocab tile.
    logits = jnp.dot(hn_ref[...], w2_ref[...],
                     preferred_element_type=jnp.float32,
                     precision=mm_precision)                     # (tm, tn) f32
    o_ref[...] = (logits + db_ref[...]).astype(o_ref.dtype)


def _const_block(shape, index_map):
    """Constant-index operand: single-buffered (saves VMEM; index never changes)."""
    try:
        return pl.BlockSpec(shape, index_map, pipeline_mode=pl.Buffered(1))
    except TypeError:  # older jax without pipeline_mode on BlockSpec
        return pl.BlockSpec(shape, index_map)


def mlm_head_forward(x, w_dense, b_dense, ln_gamma, ln_beta, w_dec, dec_bias,
                     *, eps=1e-12, tm=128, tn=256,
                     compute_dtype=jnp.bfloat16, vmem_limit_bytes=None):
    """MLMHead forward (logits only).

    x:        (B, S, H) hidden states.
    w_dense:  (H, H)  transform.dense weight, in->out layout (torch weight.T).
    b_dense:  (H,)    transform.dense bias.
    ln_gamma: (H,)    LayerNorm weight.   ln_beta: (H,) LayerNorm bias.
    w_dec:    (H, V)  decoder weight, in->out layout.   dec_bias: (V,).
    """
    B, S, H = x.shape
    V = w_dec.shape[1]
    N = B * S

    tm = min(tm, N)
    tn = min(tn, V)
    if V % tn != 0:            # ragged vocab fallback: single full-V tile
        tn = V
    n_vocab = V // tn

    xf = x.reshape(N, H)
    n_pad = (-N) % tm
    if n_pad:
        # TODO(synk): tail row block handled by padding; a masked tail block
        # would avoid this extra HBM copy (the test shape divides evenly, so
        # this path is skipped and no pad/slice round-trip happens).
        xf = jnp.pad(xf, ((0, n_pad), (0, 0)))
    Np = N + n_pad
    n_rows = Np // tm

    cdt = jnp.dtype(compute_dtype)
    w1 = w_dense.astype(cdt)                               # (H, H) resident
    w2 = w_dec.astype(cdt)                                 # (H, V) streamed by tile
    b1 = b_dense.reshape(1, H).astype(jnp.float32)
    g = ln_gamma.reshape(1, H).astype(jnp.float32)
    beta = ln_beta.reshape(1, H).astype(jnp.float32)
    db = dec_bias.reshape(1, V).astype(jnp.float32)

    # bf16 operands -> native MXU passes with f32 accumulation (precision arg
    # irrelevant). f32 operands -> pin HIGHEST so numerics don't depend on the
    # ambient default_matmul_precision.
    mm_precision = (jax.lax.Precision.HIGHEST
                    if cdt == jnp.dtype(jnp.float32) else None)

    if vmem_limit_bytes is None:
        est = (
            2 * tm * H * xf.dtype.itemsize        # x row block (double buffered)
            + H * H * cdt.itemsize                # dense weight (single buffered)
            + 3 * H * 4 + 2 * tn * 4              # biases / LN params
            + 2 * H * tn * cdt.itemsize           # decoder weight tile (double buf)
            + 2 * tm * tn * xf.dtype.itemsize     # output tile (double buf)
            + tm * H * cdt.itemsize               # hn scratch
        )
        vmem_limit_bytes = min(max(2 * est + (2 << 20), 32 << 20), 48 << 20)

    kernel = functools.partial(_mlm_head_kernel, eps=eps,
                               mm_precision=mm_precision)

    out = pl.pallas_call(
        kernel,
        out_shape=jax.ShapeDtypeStruct((Np, V), x.dtype),
        grid_spec=pltpu.PrefetchScalarGridSpec(
            num_scalar_prefetch=0,
            grid=(n_rows, n_vocab),               # vocab innermost (scratch reuse)
            in_specs=[
                pl.BlockSpec((tm, H), lambda i, j: (i, 0)),      # x row block
                _const_block((H, H), lambda i, j: (0, 0)),       # dense weight
                _const_block((1, H), lambda i, j: (0, 0)),       # dense bias
                _const_block((1, H), lambda i, j: (0, 0)),       # LN gamma
                _const_block((1, H), lambda i, j: (0, 0)),       # LN beta
                pl.BlockSpec((H, tn), lambda i, j: (0, j)),      # decoder weight tile
                pl.BlockSpec((1, tn), lambda i, j: (0, j)),      # decoder bias tile
            ],
            out_specs=pl.BlockSpec((tm, tn), lambda i, j: (i, j)),
            scratch_shapes=[pltpu.VMEM((tm, H), cdt)],           # hn (post-transform)
        ),
        compiler_params=pltpu.CompilerParams(
            dimension_semantics=("parallel", "arbitrary"),
            vmem_limit_bytes=int(vmem_limit_bytes)),
    )(xf, w1, b1, g, beta, w2, db)

    if n_pad:
        out = out[:N]
    return out.reshape(B, S, V)


def _ref_forward(x, w_dense, b_dense, ln_gamma, ln_beta, w_dec, dec_bias,
                 *, eps=1e-12, compute_dtype=jnp.float32):
    """Pure-JAX reference of MLMHead.forward (logits only).

    With compute_dtype=bf16 it mirrors the kernel's operand-dtype handling
    (bf16 MXU inputs, f32 accumulation, f32 GELU/LN)."""
    cdt = jnp.dtype(compute_dtype)
    prec = "highest" if cdt == jnp.dtype(jnp.float32) else None
    h = jnp.einsum("bsh,hk->bsk", x.astype(cdt), w_dense.astype(cdt),
                   preferred_element_type=jnp.float32, precision=prec) + b_dense
    h = 0.5 * h * (1.0 + jax.lax.erf(h * _INV_SQRT2))
    mu = jnp.mean(h, axis=-1, keepdims=True)
    var = jnp.mean((h - mu) ** 2, axis=-1, keepdims=True)
    hn = (h - mu) * jax.lax.rsqrt(var + eps) * ln_gamma + ln_beta
    return jnp.einsum("bsh,hv->bsv", hn.astype(cdt), w_dec.astype(cdt),
                      preferred_element_type=jnp.float32, precision=prec) + dec_bias


if __name__ == "__main__":
    B, S = 2, 128          # batch, seq -> N = 256 rows = 2 "parallel" row blocks
    H, V = 128, 256        # hidden_size, vocab_size (multiples of 128)
    eps = 1e-12

    key = jax.random.PRNGKey(0)
    keys = jax.random.split(key, 8)

    x = jax.random.normal(keys[0], (B, S, H), jnp.float32)

    # transform.dense: Linear(H, H). torch weight is (out, in); kernel wants (in, out).
    w_dense = (jax.random.normal(keys[1], (H, H), jnp.float32) / math.sqrt(H)).T
    b_dense = 0.1 * jax.random.normal(keys[2], (H,), jnp.float32)

    # LayerNorm(H, eps=1e-12) affine params.
    ln_gamma = 1.0 + 0.1 * jax.random.normal(keys[3], (H,), jnp.float32)
    ln_beta = 0.1 * jax.random.normal(keys[4], (H,), jnp.float32)

    # decoder: Linear(H, V, bias=False); separate bias Parameter.
    w_dec = (jax.random.normal(keys[5], (V, H), jnp.float32) / math.sqrt(H)).T
    dec_bias = 0.1 * jax.random.normal(keys[6], (V,), jnp.float32)

    # tn=128 -> 2 vocab tiles (exercises hn-scratch reuse on the "arbitrary"
    # axis); tm=128 -> 2 "parallel" row blocks (keeps both v7x TCs busy).
    out = mlm_head_forward(x, w_dense, b_dense, ln_gamma, ln_beta, w_dec,
                           dec_bias, eps=eps, tm=128, tn=128,
                           compute_dtype=jnp.bfloat16)
    out = jax.block_until_ready(out)
    assert out.shape == (B, S, V)
    assert bool(jnp.all(jnp.isfinite(out)))

    # 1) Apples-to-apples: reference with identical bf16 MXU operand handling.
    ref_bf16 = _ref_forward(x, w_dense, b_dense, ln_gamma, ln_beta, w_dec,
                            dec_bias, eps=eps, compute_dtype=jnp.bfloat16)
    err_bf16 = float(jnp.max(jnp.abs(out - ref_bf16)))
    assert jnp.allclose(out, ref_bf16, atol=5e-3, rtol=5e-3), (
        f"mismatch vs bf16-matched reference (max abs err {err_bf16})")

    # 2) Semantic check vs full-f32 reference (bf16 operands cost ~1e-3 rel).
    ref_f32 = _ref_forward(x, w_dense, b_dense, ln_gamma, ln_beta, w_dec,
                           dec_bias, eps=eps, compute_dtype=jnp.float32)
    err_f32 = float(jnp.max(jnp.abs(out - ref_f32)))
    assert jnp.allclose(out, ref_f32, atol=5e-2, rtol=5e-2), (
        f"mismatch vs f32 reference (max abs err {err_f32})")

    print("KERNEL_OK")
</pallas_src>

<mosaic_0001>
module attributes {stable_mosaic.version = 11 : i64} {
  func.func @_mlm_head_kernel(%arg0: i32, %arg1: i32, %arg2: memref<128x128xf32, #tpu.memory_space<vmem>>, %arg3: memref<128x128xbf16, #tpu.memory_space<vmem>>, %arg4: memref<1x128xf32, #tpu.memory_space<vmem>>, %arg5: memref<1x128xf32, #tpu.memory_space<vmem>>, %arg6: memref<1x128xf32, #tpu.memory_space<vmem>>, %arg7: memref<128x128xbf16, #tpu.memory_space<vmem>>, %arg8: memref<1x128xf32, #tpu.memory_space<vmem>>, %arg9: memref<128x128xf32, #tpu.memory_space<vmem>>, %arg10: memref<128x128xbf16, #tpu.memory_space<vmem>>) attributes {dimension_semantics = [#tpu.dimension_semantics<parallel>, #tpu.dimension_semantics<arbitrary>], iteration_bounds = array<i64: 2, 2>, scalar_prefetch = 0 : i64, scratch_operands = 1 : i64, tpu.core_type = #tpu.core_type<tc>, window_params = [{transform_indices = @transform_0, window_bounds = array<i64: 128, 128>}, {pipeline_mode = #tpu.pipeline_mode<synchronous>, transform_indices = @transform_1, window_bounds = array<i64: 128, 128>}, {pipeline_mode = #tpu.pipeline_mode<synchronous>, transform_indices = @transform_2, window_bounds = array<i64: 1, 128>}, {pipeline_mode = #tpu.pipeline_mode<synchronous>, transform_indices = @transform_3, window_bounds = array<i64: 1, 128>}, {pipeline_mode = #tpu.pipeline_mode<synchronous>, transform_indices = @transform_4, window_bounds = array<i64: 1, 128>}, {transform_indices = @transform_5, window_bounds = array<i64: 128, 128>}, {transform_indices = @transform_6, window_bounds = array<i64: 1, 128>}, {transform_indices = @transform_7, window_bounds = array<i64: 128, 128>}]} {
    %c0_i32 = arith.constant 0 : i32
    %0 = arith.cmpi eq, %arg1, %c0_i32 : i32
    %1 = arith.extui %0 : i1 to i32
    %c0_i32_0 = arith.constant 0 : i32
    %2 = arith.cmpi ne, %1, %c0_i32_0 : i32
    scf.if %2 {
      %c0_8 = arith.constant 0 : index
      %c0_9 = arith.constant 0 : index
      %10 = vector.load %arg2[%c0_8, %c0_9] : memref<128x128xf32, #tpu.memory_space<vmem>>, vector<128x128xf32>
      %11 = arith.truncf %10 : vector<128x128xf32> to vector<128x128xbf16>
      %c0_10 = arith.constant 0 : index
      %c0_11 = arith.constant 0 : index
      %12 = vector.load %arg3[%c0_10, %c0_11] : memref<128x128xbf16, #tpu.memory_space<vmem>>, vector<128x128xbf16>
      %cst_12 = arith.constant dense<0.000000e+00> : vector<128x128xf32>
      %13 = tpu.matmul %11, %12, %cst_12 {dimension_numbers = #tpu.dot_dimension_numbers<[1], [0], [0], [1], [0, 0, 1, 1], [], []>} : vector<128x128xbf16>, vector<128x128xbf16>, vector<128x128xf32> -> vector<128x128xf32>
      %c0_13 = arith.constant 0 : index
      %c0_14 = arith.constant 0 : index
      %14 = vector.load %arg4[%c0_13, %c0_14] : memref<1x128xf32, #tpu.memory_space<vmem>>, vector<1x128xf32>
      %15 = vector.broadcast %14 : vector<1x128xf32> to vector<128x128xf32>
      %16 = arith.addf %13, %15 : vector<128x128xf32>
      %cst_15 = arith.constant 5.000000e-01 : f32
      %17 = vector.broadcast %cst_15 : f32 to vector<128x128xf32>
      %18 = arith.mulf %17, %16 : vector<128x128xf32>
      %cst_16 = arith.constant 0.707106769 : f32
      %19 = vector.broadcast %cst_16 : f32 to vector<128x128xf32>
      %20 = arith.mulf %16, %19 : vector<128x128xf32>
      %21 = math.erf %20 : vector<128x128xf32>
      %cst_17 = arith.constant 1.000000e+00 : f32
      %22 = vector.broadcast %cst_17 : f32 to vector<128x128xf32>
      %23 = arith.addf %22, %21 : vector<128x128xf32>
      %24 = arith.mulf %18, %23 : vector<128x128xf32>
      %cst_18 = arith.constant dense<0.000000e+00> : vector<128xf32>
      %25 = vector.multi_reduction <add>, %24, %cst_18 [1] : vector<128x128xf32> to vector<128xf32>
      %26 = vector.shape_cast %25 : vector<128xf32> to vector<128x1xf32>
      %cst_19 = arith.constant 1.280000e+02 : f32
      %27 = vector.broadcast %cst_19 : f32 to vector<128x1xf32>
      %28 = arith.divf %26, %27 : vector<128x1xf32>
      %29 = vector.broadcast %28 : vector<128x1xf32> to vector<128x128xf32>
      %30 = arith.subf %24, %29 : vector<128x128xf32>
      %31 = arith.mulf %30, %30 : vector<128x128xf32>
      %cst_20 = arith.constant dense<0.000000e+00> : vector<128xf32>
      %32 = vector.multi_reduction <add>, %31, %cst_20 [1] : vector<128x128xf32> to vector<128xf32>
      %33 = vector.shape_cast %32 : vector<128xf32> to vector<128x1xf32>
      %cst_21 = arith.constant 1.280000e+02 : f32
      %34 = vector.broadcast %cst_21 : f32 to vector<128x1xf32>
      %35 = arith.divf %33, %34 : vector<128x1xf32>
      %cst_22 = arith.constant 9.99999996E-13 : f32
      %36 = vector.broadcast %cst_22 : f32 to vector<128x1xf32>
      %37 = arith.addf %35, %36 : vector<128x1xf32>
      %38 = math.rsqrt %37 : vector<128x1xf32>
      %39 = vector.broadcast %38 : vector<128x1xf32> to vector<128x128xf32>
      %40 = arith.mulf %30, %39 : vector<128x128xf32>
      %c0_23 = arith.constant 0 : index
      %c0_24 = arith.constant 0 : index
      %41 = vector.load %arg5[%c0_23, %c0_24] : memref<1x128xf32, #tpu.memory_space<vmem>>, vector<1x128xf32>
      %42 = vector.broadcast %41 : vector<1x128xf32> to vector<128x128xf32>
      %43 = arith.mulf %40, %42 : vector<128x128xf32>
      %c0_25 = arith.constant 0 : index
      %c0_26 = arith.constant 0 : index
      %44 = vector.load %arg6[%c0_25, %c0_26] : memref<1x128xf32, #tpu.memory_space<vmem>>, vector<1x128xf32>
      %45 = vector.broadcast %44 : vector<1x128xf32> to vector<128x128xf32>
      %46 = arith.addf %43, %45 : vector<128x128xf32>
      %47 = arith.truncf %46 : vector<128x128xf32> to vector<128x128xbf16>
      %c0_27 = arith.constant 0 : index
      %c0_28 = arith.constant 0 : index
      %48 = vector.load %arg10[%c0_27, %c0_28] : memref<128x128xbf16, #tpu.memory_space<vmem>>, vector<128x128xbf16>
      tpu.vector_store %arg10[%c0_27, %c0_28], %47 {strides = array<i32>} : memref<128x128xbf16, #tpu.memory_space<vmem>>, vector<128x128xbf16>,
    } else {
    }
    %c0 = arith.constant 0 : index
    %c0_1 = arith.constant 0 : index
    %3 = vector.load %arg10[%c0, %c0_1] : memref<128x128xbf16, #tpu.memory_space<vmem>>, vector<128x128xbf16>
    %c0_2 = arith.constant 0 : index
    %c0_3 = arith.constant 0 : index
    %4 = vector.load %arg7[%c0_2, %c0_3] : memref<128x128xbf16, #tpu.memory_space<vmem>>, vector<128x128xbf16>
    %cst = arith.constant dense<0.000000e+00> : vector<128x128xf32>
    %5 = tpu.matmul %3, %4, %cst {dimension_numbers = #tpu.dot_dimension_numbers<[1], [0], [0], [1], [0, 0, 1, 1], [], []>} : vector<128x128xbf16>, vector<128x128xbf16>, vector<128x128xf32> -> vector<128x128xf32>
    %c0_4 = arith.constant 0 : index
    %c0_5 = arith.constant 0 : index
    %6 = vector.load %arg8[%c0_4, %c0_5] : memref<1x128xf32, #tpu.memory_space<vmem>>, vector<1x128xf32>
    %7 = vector.broadcast %6 : vector<1x128xf32> to vector<128x128xf32>
    %8 = arith.addf %5, %7 : vector<128x128xf32>
    %c0_6 = arith.constant 0 : index
    %c0_7 = arith.constant 0 : index
    %9 = vector.load %arg9[%c0_6, %c0_7] : memref<128x128xf32, #tpu.memory_space<vmem>>, vector<128x128xf32>
    tpu.vector_store %arg9[%c0_6, %c0_7], %8 {strides = array<i32>} : memref<128x128xf32, #tpu.memory_space<vmem>>, vector<128x128xf32>,
    return
  }
  func.func @transform_0(%arg0: i32, %arg1: i32) -> (i32, i32) {
    %c0_i32 = arith.constant 0 : i32
    %c0_i32_0 = arith.constant 0 : i32
    return %arg0, %c0_i32 : i32, i32
  }
  func.func @transform_1(%arg0: i32, %arg1: i32) -> (i32, i32) {
    %c0_i32 = arith.constant 0 : i32
    %c0_i32_0 = arith.constant 0 : i32
    %c0_i32_1 = arith.constant 0 : i32
    return %c0_i32, %c0_i32_0 : i32, i32
  }
  func.func @transform_2(%arg0: i32, %arg1: i32) -> (i32, i32) {
    %c0_i32 = arith.constant 0 : i32
    %c0_i32_0 = arith.constant 0 : i32
    %c0_i32_1 = arith.constant 0 : i32
    return %c0_i32, %c0_i32_0 : i32, i32
  }
  func.func @transform_3(%arg0: i32, %arg1: i32) -> (i32, i32) {
    %c0_i32 = arith.constant 0 : i32
    %c0_i32_0 = arith.constant 0 : i32
    %c0_i32_1 = arith.constant 0 : i32
    return %c0_i32, %c0_i32_0 : i32, i32
  }
  func.func @transform_4(%arg0: i32, %arg1: i32) -> (i32, i32) {
    %c0_i32 = arith.constant 0 : i32
    %c0_i32_0 = arith.constant 0 : i32
    %c0_i32_1 = arith.constant 0 : i32
    return %c0_i32, %c0_i32_0 : i32, i32
  }
  func.func @transform_5(%arg0: i32, %arg1: i32) -> (i32, i32) {
    %c0_i32 = arith.constant 0 : i32
    %c0_i32_0 = arith.constant 0 : i32
    return %c0_i32, %arg1 : i32, i32
  }
  func.func @transform_6(%arg0: i32, %arg1: i32) -> (i32, i32) {
    %c0_i32 = arith.constant 0 : i32
    %c0_i32_0 = arith.constant 0 : i32
    return %c0_i32, %arg1 : i32, i32
  }
  func.func @transform_7(%arg0: i32, %arg1: i32) -> (i32, i32) {
    %c0_i32 = arith.constant 0 : i32
    return %arg0, %arg1 : i32, i32
  }
}

</mosaic_0001>

<llo_original>
// kernel: tpu_custom_call.1
$region0: #{tpu_custom_call.1}
  #allocation0 [shape = 'u32[]', space=smem, size = 0x4, offset = 0x4, fixed_abs, tag = 'smem constant byte address 0x4 - core index']
  #allocation1 [shape = 'u32[144,128]{1,0:T(1,128)}', space=vmem, size = 0x12000, scoped, tag = 'internal scratch']
  #allocation2 [shape = 'bf16[128,128]{1,0:T(16,128)(2,1)}', space=vmem, size = 0x8000, scoped, tag = 'scratch operand']
  %s0 = inlined_call_operand.hbm [shape: f32[256,128], index: 0, kind: input, shape index: {}]
  %s1 = inlined_call_operand.hbm [shape: bf16[128,128], index: 1, kind: input, shape index: {}]
  %s2 = inlined_call_operand.vmem [shape: f32[1,128], index: 2, kind: input, shape index: {}]
  %s3 = inlined_call_operand.vmem [shape: f32[1,128], index: 3, kind: input, shape index: {}]
  %s4 = inlined_call_operand.vmem [shape: f32[1,128], index: 4, kind: input, shape index: {}]
  %s5 = inlined_call_operand.hbm [shape: bf16[128,256], index: 5, kind: input, shape index: {}]
  %s6 = inlined_call_operand.vmem [shape: f32[1,256], index: 6, kind: input, shape index: {}]
  %s7 = inlined_call_operand.hbm [shape: f32[256,256], index: 7, kind: output, shape index: {}]
  %s8 = sld [smem:[#allocation0]]
  $region77: #{tpu_custom_call.1} parent=0
    _
  %s10 = ssub.s32 1, %s8
  %s11 = scalar_select 0, %s10, %s8
  $region1: #{tpu_custom_call.1} parent=0
    #allocation3 [shape = 'u8[131072]{0}', space=vmem, size = 0x20000, scoped, tag = 'input window, operand 0']
    #allocation4 [shape = 's32[2]{0}', space=sflag, size = 0x8, scoped, tag = 'scoped memory for tpu_custom_call.1']
    #allocation5 [shape = 's32[2]{0}', space=sflag, size = 0x8, scoped, tag = 'scoped memory for tpu_custom_call.1']
    #allocation6 [shape = 'u8[32768]{0}', space=vmem, size = 0x8000, scoped, tag = 'input window, operand 1, single buffered']
    #allocation7 [shape = 's32[1]{0}', space=sflag, size = 0x4, scoped, tag = 'scoped memory for tpu_custom_call.1']
    #allocation8 [shape = 'u8[65536]{0}', space=vmem, size = 0x10000, scoped, tag = 'input window, operand 5']
    #allocation9 [shape = 'u8[131072]{0}', space=vmem, size = 0x20000, scoped, tag = 'output window, operand 0']
    %12 = vsyncpa [#allocation4], 0
    %s13 = scalar_lea.sflag [#allocation4], 1
    %14 = vsyncpa %s13, 0
    %15 = vsyncpa [#allocation7], 0
    %16 = vsyncpa [#allocation5], 0
    %s17 = scalar_lea.sflag [#allocation5], 1
    %18 = vsyncpa %s17, 0
    loop: start=0, step=1, limit=6
    $region2: #{tpu_custom_call.1} parent=1 // loop_pre_header
      _
    $region3: #{tpu_custom_call.1} parent=1 // loop_header
      %s20 = sphi 0, %s24
      %p21 = scmp.ge.s32.totalorder %s20, 6
      %s27 = sphi 0, %s39
      %s28 = sphi 0, %s35
      %s29 = sphi 0, %s27
      %s30 = sphi 0, %s28
      %s31 = sphi 0, %s29
      %s32 = sphi 0, %s30
      %s42 = sphi 0, %s44
      %s45 = sphi 0, %s42
      %s46 = sphi 0, %s45
      %s62 = sphi 0, %s46
      %s66 = sphi 0, %s66
      %s68 = sphi 0, %s66
      %s69 = sphi 0, %s68
      %s83 = sphi 0, %s69
      %s87 = sphi 0, %s87
      %s89 = sphi 0, %s87
      %s90 = sphi 0, %s89
      %s104 = sphi 0, %s90
      %s108 = sphi 0, %s108
      %s110 = sphi 0, %s108
      %s111 = sphi 0, %s110
      %s125 = sphi 0, %s111
      %s129 = sphi 0, %s129
      %s131 = sphi 0, %s129
      %s132 = sphi 0, %s131
      %s146 = sphi 0, %s132
      %s152 = sphi 0, %s154
      %s155 = sphi 0, %s152
      %s156 = sphi 0, %s155
      %s172 = sphi 0, %s156
      %s178 = sphi 0, %s180
      %s181 = sphi 0, %s178
      %s182 = sphi 0, %s181
      %s198 = sphi 0, %s182
      %s206 = sphi 0, %s208
      %s209 = sphi 0, %s206
      %s210 = sphi 0, %s209
      %s226 = sphi 0, %s210
    $region4: #{tpu_custom_call.1} parent=1 // loop_header_branch
      %23 = sbr.rel (%p21) target = $region8
    $region5: #{tpu_custom_call.1} parent=1 // loop_body
      %s25 = ssub.s32 %s20, 1
      %s26 = ssub.s32 %s20, 2
      %s33 = sadd.s32 1, %s28
      %p34 = scmp.ge.s32.totalorder %s33, 2
      %s35 = scalar_select %p34, 0, %s33
      %s36 = sadd.s32 1, %s27
      %s37 = scalar_select %p34, %s36, %s27
      %p38 = scmp.ge.s32.totalorder %s37, 2
      %s39 = scalar_select %p38, 0, %s37
      %s40 = ssub.s32 %s27, %s39
      %p41 = scmp.eq.s32.totalorder %s40, 0
      %s43 = sadd.s32 %s42, 1
      %s44 = scalar_select %p41, %s42, %s43
      %p47 = pneg %p41
      %p48 = scmp.eq.s32.totalorder %s20, 3
      %p49 = por %p47, %p48
      %p50 = scmp.ne.s32.totalorder %s42, %s45
      %p51 = scmp.eq.s32.totalorder %s20, 0
      %p52 = por %p50, %p51
      %p53 = scmp.ne.s32.totalorder %s42, %s45
      %p54 = scmp.eq.s32.totalorder %s25, 3
      %p55 = por %p53, %p54
      %p56 = scmp.ne.s32.totalorder %s45, %s46
      %p57 = scmp.eq.s32.totalorder %s25, 0
      %p58 = por %p56, %p57
      %p59 = scmp.ne.s32.totalorder %s45, %s46
      %p60 = scmp.eq.s32.totalorder %s26, 3
      %p61 = por %p59, %p60
      %p63 = scmp.ne.s32.totalorder %s46, %s62
      %p64 = scmp.eq.s32.totalorder %s26, 0
      %p65 = por %p63, %p64
      %s67 = sadd.s32 %s66, 1
      %p70 = scmp.eq.s32.totalorder %s20, 3
      %p71 = scmp.ne.s32.totalorder %s66, %s68
      %p72 = scmp.eq.s32.totalorder %s20, 0
      %p73 = por %p71, %p72
      %p74 = scmp.ne.s32.totalorder %s66, %s68
      %p75 = scmp.eq.s32.totalorder %s25, 3
      %p76 = por %p74, %p75
      %p77 = scmp.ne.s32.totalorder %s68, %s69
      %p78 = scmp.eq.s32.totalorder %s25, 0
      %p79 = por %p77, %p78
      %p80 = scmp.ne.s32.totalorder %s68, %s69
      %p81 = scmp.eq.s32.totalorder %s26, 3
      %p82 = por %p80, %p81
      %p84 = scmp.ne.s32.totalorder %s69, %s83
      %p85 = scmp.eq.s32.totalorder %s26, 0
      %p86 = por %p84, %p85
      %s88 = sadd.s32 %s87, 1
      %p91 = scmp.eq.s32.totalorder %s20, 3
      %p92 = scmp.ne.s32.totalorder %s87, %s89
      %p93 = scmp.eq.s32.totalorder %s20, 0
      %p94 = por %p92, %p93
      %p95 = scmp.ne.s32.totalorder %s87, %s89
      %p96 = scmp.eq.s32.totalorder %s25, 3
      %p97 = por %p95, %p96
      %p98 = scmp.ne.s32.totalorder %s89, %s90
      %p99 = scmp.eq.s32.totalorder %s25, 0
      %p100 = por %p98, %p99
      %p101 = scmp.ne.s32.totalorder %s89, %s90
      %p102 = scmp.eq.s32.totalorder %s26, 3
      %p103 = por %p101, %p102
      %p105 = scmp.ne.s32.totalorder %s90, %s104
      %p106 = scmp.eq.s32.totalorder %s26, 0
      %p107 = por %p105, %p106
      %s109 = sadd.s32 %s108, 1
      %p112 = scmp.eq.s32.totalorder %s20, 3
      %p113 = scmp.ne.s32.totalorder %s108, %s110
      %p114 = scmp.eq.s32.totalorder %s20, 0
      %p115 = por %p113, %p114
      %p116 = scmp.ne.s32.totalorder %s108, %s110
      %p117 = scmp.eq.s32.totalorder %s25, 3
      %p118 = por %p116, %p117
      %p119 = scmp.ne.s32.totalorder %s110, %s111
      %p120 = scmp.eq.s32.totalorder %s25, 0
      %p121 = por %p119, %p120
      %p122 = scmp.ne.s32.totalorder %s110, %s111
      %p123 = scmp.eq.s32.totalorder %s26, 3
      %p124 = por %p122, %p123
      %p126 = scmp.ne.s32.totalorder %s111, %s125
      %p127 = scmp.eq.s32.totalorder %s26, 0
      %p128 = por %p126, %p127
      %s130 = sadd.s32 %s129, 1
      %p133 = scmp.eq.s32.totalorder %s20, 3
      %p134 = scmp.ne.s32.totalorder %s129, %s131
      %p135 = scmp.eq.s32.totalorder %s20, 0
      %p136 = por %p134, %p135
      %p137 = scmp.ne.s32.totalorder %s129, %s131
      %p138 = scmp.eq.s32.totalorder %s25, 3
      %p139 = por %p137, %p138
      %p140 = scmp.ne.s32.totalorder %s131, %s132
      %p141 = scmp.eq.s32.totalorder %s25, 0
      %p142 = por %p140, %p141
      %p143 = scmp.ne.s32.totalorder %s131, %s132
      %p144 = scmp.eq.s32.totalorder %s26, 3
      %p145 = por %p143, %p144
      %p147 = scmp.ne.s32.totalorder %s132, %s146
      %p148 = scmp.eq.s32.totalorder %s26, 0
      %p149 = por %p147, %p148
      %s150 = ssub.s32 %s28, %s35
      %p151 = scmp.eq.s32.totalorder %s150, 0
      %s153 = sadd.s32 %s152, 1
      %s154 = scalar_select %p151, %s152, %s153
      %p157 = pneg %p151
      %p158 = scmp.eq.s32.totalorder %s20, 3
      %p159 = por %p157, %p158
      %p160 = scmp.ne.s32.totalorder %s152, %s155
      %p161 = scmp.eq.s32.totalorder %s20, 0
      %p162 = por %p160, %p161
      %p163 = scmp.ne.s32.totalorder %s152, %s155
      %p164 = scmp.eq.s32.totalorder %s25, 3
      %p165 = por %p163, %p164
      %p166 = scmp.ne.s32.totalorder %s155, %s156
      %p167 = scmp.eq.s32.totalorder %s25, 0
      %p168 = por %p166, %p167
      %p169 = scmp.ne.s32.totalorder %s155, %s156
      %p170 = scmp.eq.s32.totalorder %s26, 3
      %p171 = por %p169, %p170
      %p173 = scmp.ne.s32.totalorder %s156, %s172
      %p174 = scmp.eq.s32.totalorder %s26, 0
      %p175 = por %p173, %p174
      %s176 = ssub.s32 %s28, %s35
      %p177 = scmp.eq.s32.totalorder %s176, 0
      %s179 = sadd.s32 %s178, 1
      %s180 = scalar_select %p177, %s178, %s179
      %p183 = pneg %p177
      %p184 = scmp.eq.s32.totalorder %s20, 3
      %p185 = por %p183, %p184
      %p186 = scmp.ne.s32.totalorder %s178, %s181
      %p187 = scmp.eq.s32.totalorder %s20, 0
      %p188 = por %p186, %p187
      %p189 = scmp.ne.s32.totalorder %s178, %s181
      %p190 = scmp.eq.s32.totalorder %s25, 3
      %p191 = por %p189, %p190
      %p192 = scmp.ne.s32.totalorder %s181, %s182
      %p193 = scmp.eq.s32.totalorder %s25, 0
      %p194 = por %p192, %p193
      %p195 = scmp.ne.s32.totalorder %s181, %s182
      %p196 = scmp.eq.s32.totalorder %s26, 3
      %p197 = por %p195, %p196
      %p199 = scmp.ne.s32.totalorder %s182, %s198
      %p200 = scmp.eq.s32.totalorder %s26, 0
      %p201 = por %p199, %p200
      %s202 = ssub.s32 %s27, %s39
      %s203 = ssub.s32 %s28, %s35
      %s204 = sor.u32 %s202, %s203
      %p205 = scmp.eq.s32.totalorder %s204, 0
      %s207 = sadd.s32 %s206, 1
      %s208 = scalar_select %p205, %s206, %s207
      %p211 = pneg %p205
      %p212 = scmp.eq.s32.totalorder %s20, 3
      %p213 = por %p211, %p212
      %p214 = scmp.ne.s32.totalorder %s206, %s209
      %p215 = scmp.eq.s32.totalorder %s20, 0
      %p216 = por %p214, %p215
      %p217 = scmp.ne.s32.totalorder %s206, %s209
      %p218 = scmp.eq.s32.totalorder %s25, 3
      %p219 = por %p217, %p218
      %p220 = scmp.ne.s32.totalorder %s209, %s210
      %p221 = scmp.eq.s32.totalorder %s25, 0
      %p222 = por %p220, %p221
      %p223 = scmp.ne.s32.totalorder %s209, %s210
      %p224 = scmp.eq.s32.totalorder %s26, 3
      %p225 = por %p223, %p224
      %p227 = scmp.ne.s32.totalorder %s210, %s226
      %p228 = scmp.eq.s32.totalorder %s26, 0
      %p229 = por %p227, %p228
      %p230 = scmp.le.s32.totalorder 1, %s20
      %p231 = scmp.lt.s32.totalorder %s20, 5
      %p232 = pnand %p230, %p231
      %p233 = pneg %p232
      // Predicated region
      $region9: #{tpu_custom_call.1} parent=5 // pred_check
        _
      $region10: #{tpu_custom_call.1} parent=5 // pred_check_branch
        %235 = sbr.rel (%p232) target = $region12
      $region11: #{tpu_custom_call.1} parent=5 // pred_region
        %s236 = ssub.s32 %s20, 1
        // Predicated region
        $region13: #{tpu_custom_call.1} parent=11 // pred_check
          %p237 = pneg %p79
        $region14: #{tpu_custom_call.1} parent=11 // pred_check_branch
          %239 = sbr.rel (%p237) target = $region16
        $region15: #{tpu_custom_call.1} parent=11 // pred_region
          %s241 = ssub.s32 1024, 1024
          %242 = vsyncadd [#allocation7], %s241
          %s243 = sshll.u32 [#allocation6], 4
          %s244 = int_to_ptr.vmem [resolvable:$true] %s243
          %249 = dma.hbm_to_vmem [thread:$0]  %s1, 1024, %s244, [#allocation7], 64, 64, 4
        $region16: #{tpu_custom_call.1} parent=11 // pred_fallthru
          _
        // Predicated region
        $region17: #{tpu_custom_call.1} parent=11 // pred_check
          %p250 = pneg %p100
        $region18: #{tpu_custom_call.1} parent=11 // pred_check_branch
          %252 = sbr.rel (%p250) target = $region20
        $region19: #{tpu_custom_call.1} parent=11 // pred_region
          _
        $region20: #{tpu_custom_call.1} parent=11 // pred_fallthru
          _
        // Predicated region
        $region21: #{tpu_custom_call.1} parent=11 // pred_check
          %p253 = pneg %p121
        $region22: #{tpu_custom_call.1} parent=11 // pred_check_branch
          %255 = sbr.rel (%p253) target = $region24
        $region23: #{tpu_custom_call.1} parent=11 // pred_region
          _
        $region24: #{tpu_custom_call.1} parent=11 // pred_fallthru
          _
        // Predicated region
        $region25: #{tpu_custom_call.1} parent=11 // pred_check
          %p256 = pneg %p142
        $region26: #{tpu_custom_call.1} parent=11 // pred_check_branch
          %258 = sbr.rel (%p256) target = $region28
        $region27: #{tpu_custom_call.1} parent=11 // pred_region
          _
        $region28: #{tpu_custom_call.1} parent=11 // pred_fallthru
          _
      $region12: #{tpu_custom_call.1} parent=5 // pred_fallthru
        _
      %p259 = scmp.lt.s32.totalorder %s20, 4
      // Predicated region
      $region29: #{tpu_custom_call.1} parent=5 // pred_check
        %p260 = pneg %p259
      $region30: #{tpu_custom_call.1} parent=5 // pred_check_branch
        %262 = sbr.rel (%p260) target = $region32
      $region31: #{tpu_custom_call.1} parent=5 // pred_region
        // Predicated region
        $region33: #{tpu_custom_call.1} parent=31 // pred_check
          %p263 = pneg %p52
        $region34: #{tpu_custom_call.1} parent=31 // pred_check_branch
          %265 = sbr.rel (%p263) target = $region36
        $region35: #{tpu_custom_call.1} parent=31 // pred_region
          %s266 = sand.u32 %s20, 1
          %s267 = scalar_lea.sflag [#allocation4], %s266
          %s268 = sand.u32 %s42, 1
          %s269 = smul.addr %s268, 128
          %s270 = scalar_lea.vmem [#allocation3], %s269
          %s271 = smul.u32 16, %s27
          %s273 = ssub.s32 2048, 2048
          %274 = vsyncadd %s267, %s273
          %s275 = smul.addr %s271, 128
          %s276 = scalar_lea.hbm %s0, %s275
          %s277 = sshll.u32 %s270, 4
          %s278 = int_to_ptr.vmem [resolvable:$true] %s277
          %283 = dma.hbm_to_vmem [thread:$0]  %s276, 2048, %s278, %s267, 128, 128, 8
        $region36: #{tpu_custom_call.1} parent=31 // pred_fallthru
          _
        // Predicated region
        $region37: #{tpu_custom_call.1} parent=31 // pred_check
          %p284 = pneg %p162
        $region38: #{tpu_custom_call.1} parent=31 // pred_check_branch
          %286 = sbr.rel (%p284) target = $region40
        $region39: #{tpu_custom_call.1} parent=31 // pred_region
          %s287 = sand.u32 %s20, 1
          %s288 = scalar_lea.sflag [#allocation4], %s287
          %s289 = sand.u32 %s152, 1
          %s290 = smul.addr %s289, 64
          %s291 = scalar_lea.vmem [#allocation8], %s290
          %s293 = ssub.s32 1024, 1024
          %294 = vsyncadd %s288, %s293
          %s295 = smul.addr %s28, 64
          %s296 = scalar_lea.hbm %s5, %s295
          %s297 = sshll.u32 %s291, 4
          %s298 = int_to_ptr.vmem [resolvable:$true] %s297
          %303 = dma.hbm_to_vmem [thread:$0]  %s296, 1024, %s298, %s288, 128, 64, 4
        $region40: #{tpu_custom_call.1} parent=31 // pred_fallthru
          _
        // Predicated region
        $region41: #{tpu_custom_call.1} parent=31 // pred_check
          %p304 = pneg %p188
        $region42: #{tpu_custom_call.1} parent=31 // pred_check_branch
          %306 = sbr.rel (%p304) target = $region44
        $region43: #{tpu_custom_call.1} parent=31 // pred_region
          %p307 = scmp.lt.s32.totalorder %s28, 1
          %s308 = scalar_select %p307, %s28, 1
          %s309 = scalar_lea.vmem %s6, %s308
        $region44: #{tpu_custom_call.1} parent=31 // pred_fallthru
          _
      $region32: #{tpu_custom_call.1} parent=5 // pred_fallthru
        _
      %p310 = scmp.le.s32.totalorder 1, %s20
      %p311 = scmp.lt.s32.totalorder %s20, 5
      %p312 = pnand %p310, %p311
      %p313 = pneg %p312
      // Predicated region
      $region45: #{tpu_custom_call.1} parent=5 // pred_check
        _
      $region46: #{tpu_custom_call.1} parent=5 // pred_check_branch
        %315 = sbr.rel (%p312) target = $region48
      $region47: #{tpu_custom_call.1} parent=5 // pred_region
        %s316 = ssub.s32 %s20, 1
        %s317 = sand.u32 %s25, 1
        %s318 = scalar_lea.sflag [#allocation4], %s317
        %s319 = sand.u32 %s45, 1
        %s320 = smul.addr %s319, 128
        %s321 = scalar_lea.vmem [#allocation3], %s320
        // Predicated region
        $region49: #{tpu_custom_call.1} parent=47 // pred_check
          %p322 = pneg %p58
        $region50: #{tpu_custom_call.1} parent=47 // pred_check_branch
          %324 = sbr.rel (%p322) target = $region52
        $region51: #{tpu_custom_call.1} parent=47 // pred_region
          %325 = dma.done %s318, 2048
        $region52: #{tpu_custom_call.1} parent=47 // pred_fallthru
          _
        // Predicated region
        $region53: #{tpu_custom_call.1} parent=47 // pred_check
          %p326 = pneg %p79
        $region54: #{tpu_custom_call.1} parent=47 // pred_check_branch
          %328 = sbr.rel (%p326) target = $region56
        $region55: #{tpu_custom_call.1} parent=47 // pred_region
          %329 = dma.done [#allocation7], 1024
        $region56: #{tpu_custom_call.1} parent=47 // pred_fallthru
          _
        %s330 = sand.u32 %s25, 1
        %s331 = scalar_lea.sflag [#allocation4], %s330
        %s332 = sand.u32 %s155, 1
        %s333 = smul.addr %s332, 64
        %s334 = scalar_lea.vmem [#allocation8], %s333
        // Predicated region
        $region57: #{tpu_custom_call.1} parent=47 // pred_check
          %p335 = pneg %p168
        $region58: #{tpu_custom_call.1} parent=47 // pred_check_branch
          %337 = sbr.rel (%p335) target = $region60
        $region59: #{tpu_custom_call.1} parent=47 // pred_region
          %338 = dma.done %s331, 1024
        $region60: #{tpu_custom_call.1} parent=47 // pred_fallthru
          _
        %s339 = sand.u32 %s25, 1
        %s340 = scalar_lea.sflag [#allocation4], %s339
        %s341 = sand.u32 %s45, 1
        %s342 = smul.addr %s341, 128
        %s343 = scalar_lea.vmem [#allocation3], %s342
        %p344 = pneg %p58
        %p345 = pneg %p55
        %p346 = pneg %p79
        %p347 = pneg %p76
        %p348 = pneg %p100
        %p349 = pneg %p97
        %p350 = pneg %p121
        %p351 = pneg %p118
        %p352 = pneg %p142
        %p353 = pneg %p139
        %s354 = sand.u32 %s25, 1
        %s355 = scalar_lea.sflag [#allocation4], %s354
        %s356 = sand.u32 %s155, 1
        %s357 = smul.addr %s356, 64
        %s358 = scalar_lea.vmem [#allocation8], %s357
        %p359 = pneg %p168
        %p360 = pneg %p165
        %p361 = scmp.lt.s32.totalorder %s30, 1
        %s362 = scalar_select %p361, %s30, 1
        %s363 = scalar_lea.vmem %s6, %s362
        %p364 = pneg %p194
        %p365 = pneg %p191
        %p366 = pneg %p222
        %p367 = pneg %p219
        %s368 = sand.u32 %s209, 1
        %s369 = scalar_lea.sflag [#allocation5], %s368
        %s370 = sand.u32 %s209, 1
        %s371 = smul.addr %s370, 128
        %s372 = scalar_lea.vmem [#allocation9], %s371
        %s373 = smul.u32 16, %s29
        %p374 = scmp.lt.s32.totalorder %s30, 1
        %s375 = scalar_select %p374, %s30, 1
        %s376 = scalar_lea.vmem %s6, %s375
        %s377 = smul.u32 16, %s29
        %p379 = scmp.eq.s32.totalorder %s30, 0
        // Predicated region
        $region61: #{tpu_custom_call.1} parent=47 // pred_check
          %p380 = pneg %p379
        $region62: #{tpu_custom_call.1} parent=47 // pred_check_branch
          %382 = sbr.rel (%p380) target = $region64
        $region63: #{tpu_custom_call.1} parent=47 // pred_region
          %v383 = vld [vmem:[%s321] sm:$0xff]
          %v384 = vld [vmem:[%s321 + $0x8] sm:$0xff]
          %v385 = vld [vmem:[%s321 + $0x10] sm:$0xff]
          %v386 = vld [vmem:[%s321 + $0x18] sm:$0xff]
          %v387 = vld [vmem:[%s321 + $0x20] sm:$0xff]
          %v388 = vld [vmem:[%s321 + $0x28] sm:$0xff]
          %v389 = vld [vmem:[%s321 + $0x30] sm:$0xff]
          %v390 = vld [vmem:[%s321 + $0x38] sm:$0xff]
          %v391 = vld [vmem:[%s321 + $0x40] sm:$0xff]
          %v392 = vld [vmem:[%s321 + $0x48] sm:$0xff]
          %v393 = vld [vmem:[%s321 + $0x50] sm:$0xff]
          %v394 = vld [vmem:[%s321 + $0x58] sm:$0xff]
          %v395 = vld [vmem:[%s321 + $0x60] sm:$0xff]
          %v396 = vld [vmem:[%s321 + $0x68] sm:$0xff]
          %v397 = vld [vmem:[%s321 + $0x70] sm:$0xff]
          %v398 = vld [vmem:[%s321 + $0x78] sm:$0xff]
          %v399 = vpack.c.bf16 %v384, %v383
          %v400 = vpack.c.bf16 %v386, %v385
          %v401 = vpack.c.bf16 %v388, %v387
          %v402 = vpack.c.bf16 %v390, %v389
          %v403 = vpack.c.bf16 %v392, %v391
          %v404 = vpack.c.bf16 %v394, %v393
          %v405 = vpack.c.bf16 %v396, %v395
          %v406 = vpack.c.bf16 %v398, %v397
          %v407 = vld [vmem:[#allocation6] sm:$0xf]
          %v408 = vld [vmem:[#allocation6 + $0x4] sm:$0xf]
          %v409 = vld [vmem:[#allocation6 + $0x8] sm:$0xf]
          %v410 = vld [vmem:[#allocation6 + $0xc] sm:$0xf]
          %v411 = vld [vmem:[#allocation6 + $0x10] sm:$0xf]
          %v412 = vld [vmem:[#allocation6 + $0x14] sm:$0xf]
          %v413 = vld [vmem:[#allocation6 + $0x18] sm:$0xf]
          %v414 = vld [vmem:[#allocation6 + $0x1c] sm:$0xf]
          %v415 = vld [vmem:[#allocation6 + $0x20] sm:$0xf]
          %v416 = vld [vmem:[#allocation6 + $0x24] sm:$0xf]
          %v417 = vld [vmem:[#allocation6 + $0x28] sm:$0xf]
          %v418 = vld [vmem:[#allocation6 + $0x2c] sm:$0xf]
          %v419 = vld [vmem:[#allocation6 + $0x30] sm:$0xf]
          %v420 = vld [vmem:[#allocation6 + $0x34] sm:$0xf]
          %v421 = vld [vmem:[#allocation6 + $0x38] sm:$0xf]
          %v422 = vld [vmem:[#allocation6 + $0x3c] sm:$0xf]
          %v423 = vld [vmem:[%s2] sm:$0x1]
          %v425 = vlaneseq
          %v426 = vshrl.u32 %v425, 7
          %v427 = vsub.s32 0, %v426
          %v428 = vrot.slane %v423, %v427
          %v446 = vunpack.c.l.b16 %v407
          %v447 = vunpack.c.l.b16 %v408
          %v448 = vunpack.c.l.b16 %v409
          %v449 = vunpack.c.l.b16 %v410
          %v450 = vunpack.c.l.b16 %v411
          %v451 = vunpack.c.l.b16 %v412
          %v452 = vunpack.c.l.b16 %v413
          %v453 = vunpack.c.l.b16 %v414
          %v454 = vunpack.c.l.b16 %v415
          %v455 = vunpack.c.l.b16 %v416
          %v456 = vunpack.c.l.b16 %v417
          %v457 = vunpack.c.l.b16 %v418
          %v458 = vunpack.c.l.b16 %v419
          %v459 = vunpack.c.l.b16 %v420
          %v460 = vunpack.c.l.b16 %v421
          %v461 = vunpack.c.l.b16 %v422
          %v462 = vpack.c.b16 %v447, %v446
          %v463 = vpack.c.b16 %v449, %v448
          %v464 = vpack.c.b16 %v451, %v450
          %v465 = vpack.c.b16 %v453, %v452
          %v466 = vpack.c.b16 %v455, %v454
          %v467 = vpack.c.b16 %v457, %v456
          %v468 = vpack.c.b16 %v459, %v458
          %v469 = vpack.c.b16 %v461, %v460
          %478 = vmatprep.subr.bf16.mxu0 0
          %479 = vmatpush1.bf16.msra.mxu0 %v462
          %480 = vmatprep.subr.bf16.mxu0 0
          %481 = vmatpush1.bf16.msra.mxu0 %v463
          %482 = vmatprep.subr.bf16.mxu0 0
          %483 = vmatpush1.bf16.msra.mxu0 %v464
          %484 = vmatprep.subr.bf16.mxu0 0
          %485 = vmatpush1.bf16.msra.mxu0 %v465
          %486 = vmatprep.subr.bf16.mxu0 0
          %487 = vmatpush1.bf16.msra.mxu0 %v466
          %488 = vmatprep.subr.bf16.mxu0 0
          %489 = vmatpush1.bf16.msra.mxu0 %v467
          %490 = vmatprep.subr.bf16.mxu0 0
          %491 = vmatpush1.bf16.msra.mxu0 %v468
          %492 = vmatprep.subr.bf16.mxu0 0
          %493 = vmatpush1.bf16.msra.mxu0 %v469
          %494 = vmatprep.subr.bf16.mxu0 0
          %495 = vmatpush1.bf16.msra.mxu0 0
          %496 = vmatprep.subr.bf16.mxu0 0
          %497 = vmatpush1.bf16.msra.mxu0 0
          %498 = vmatprep.subr.bf16.mxu0 0
          %499 = vmatpush1.bf16.msra.mxu0 0
          %500 = vmatprep.subr.bf16.mxu0 0
          %501 = vmatpush1.bf16.msra.mxu0 0
          %502 = vmatprep.subr.bf16.mxu0 0
          %503 = vmatpush1.bf16.msra.mxu0 0
          %504 = vmatprep.subr.bf16.mxu0 0
          %505 = vmatpush1.bf16.msra.mxu0 0
          %506 = vmatprep.subr.bf16.mxu0 0
          %507 = vmatpush1.bf16.msra.mxu0 0
          %508 = vmatprep.subr.bf16.mxu0 0
          %509 = vmatpush1.bf16.msra.mxu0 0
          %510 = vmatprep.mubr.bf16.mxu0 0
          %511 = vmatmul.mubr.bf16.gmra.mrb[0].mxu0 %v399
          %v512 = vpop.f32.mrb[0].mxu0
          %v513 = vadd.f32 %v428, %v512
          %v514 = vpop.f32.mrb[0].mxu0
          %v515 = vpop.f32.mrb[0].mxu0
          %v516 = vadd.f32 %v428, %v515
          %v517 = vpop.f32.mrb[0].mxu0
          %518 = vmatprep.mubr.bf16.mxu0 0
          %519 = vmatmul.mubr.bf16.gmra.mrb[0].mxu0 %v400
          %v520 = vpop.f32.mrb[0].mxu0
          %v521 = vadd.f32 %v428, %v520
          %v522 = vpop.f32.mrb[0].mxu0
          %v523 = vpop.f32.mrb[0].mxu0
          %v524 = vadd.f32 %v428, %v523
          %v525 = vpop.f32.mrb[0].mxu0
          %526 = vmatprep.mubr.bf16.mxu0 0
          %527 = vmatmul.mubr.bf16.gmra.mrb[0].mxu0 %v401
          %v528 = vpop.f32.mrb[0].mxu0
          %v529 = vadd.f32 %v428, %v528
          %v530 = vpop.f32.mrb[0].mxu0
          %v531 = vpop.f32.mrb[0].mxu0
          %v532 = vadd.f32 %v428, %v531
          %v533 = vpop.f32.mrb[0].mxu0
          %534 = vmatprep.mubr.bf16.mxu0 0
          %535 = vmatmul.mubr.bf16.gmra.mrb[0].mxu0 %v402
          %v536 = vpop.f32.mrb[0].mxu0
          %v537 = vadd.f32 %v428, %v536
          %v538 = vpop.f32.mrb[0].mxu0
          %v539 = vpop.f32.mrb[0].mxu0
          %v540 = vadd.f32 %v428, %v539
          %v541 = vpop.f32.mrb[0].mxu0
          %542 = vmatprep.mubr.bf16.mxu0 0
          %543 = vmatmul.mubr.bf16.gmra.mrb[0].mxu0 %v403
          %v544 = vpop.f32.mrb[0].mxu0
          %v545 = vadd.f32 %v428, %v544
          %v546 = vpop.f32.mrb[0].mxu0
          %v547 = vpop.f32.mrb[0].mxu0
          %v548 = vadd.f32 %v428, %v547
          %v549 = vpop.f32.mrb[0].mxu0
          %550 = vmatprep.mubr.bf16.mxu0 0
          %551 = vmatmul.mubr.bf16.gmra.mrb[0].mxu0 %v404
          %v552 = vpop.f32.mrb[0].mxu0
          %v553 = vadd.f32 %v428, %v552
          %v554 = vpop.f32.mrb[0].mxu0
          %v555 = vpop.f32.mrb[0].mxu0
          %v556 = vadd.f32 %v428, %v555
          %v557 = vpop.f32.mrb[0].mxu0
          %558 = vmatprep.mubr.bf16.mxu0 0
          %559 = vmatmul.mubr.bf16.gmra.mrb[0].mxu0 %v405
          %v560 = vpop.f32.mrb[0].mxu0
          %v561 = vadd.f32 %v428, %v560
          %v562 = vpop.f32.mrb[0].mxu0
          %v563 = vpop.f32.mrb[0].mxu0
          %v564 = vadd.f32 %v428, %v563
          %v565 = vpop.f32.mrb[0].mxu0
          %566 = vmatprep.mubr.bf16.mxu0 0
          %567 = vmatmul.mubr.bf16.gmra.mrb[0].mxu0 %v406
          %v568 = vpop.f32.mrb[0].mxu0
          %v569 = vadd.f32 %v428, %v568
          %v570 = vpop.f32.mrb[0].mxu0
          %v571 = vpop.f32.mrb[0].mxu0
          %v572 = vadd.f32 %v428, %v571
          %v573 = vpop.f32.mrb[0].mxu0
          %574 = vdwg.mxu0
          %v575 = vmul.f32 %v513, 0.5
          %v576 = vmul.f32 %v516, 0.5
          %v577 = vmul.f32 %v521, 0.5
          %v578 = vmul.f32 %v524, 0.5
          %v579 = vmul.f32 %v529, 0.5
          %v580 = vmul.f32 %v532, 0.5
          %v581 = vmul.f32 %v537, 0.5
          %v582 = vmul.f32 %v540, 0.5
          %v583 = vmul.f32 %v545, 0.5
          %v584 = vmul.f32 %v548, 0.5
          %v585 = vmul.f32 %v553, 0.5
          %v586 = vmul.f32 %v556, 0.5
          %v587 = vmul.f32 %v561, 0.5
          %v588 = vmul.f32 %v564, 0.5
          %v589 = vmul.f32 %v569, 0.5
          %v590 = vmul.f32 %v572, 0.5
          %v591 = vmul.f32 %v513, 0.70710677
          %v592 = vmul.f32 %v516, 0.70710677
          %v593 = vmul.f32 %v521, 0.70710677
          %v594 = vmul.f32 %v524, 0.70710677
          %v595 = vmul.f32 %v529, 0.70710677
          %v596 = vmul.f32 %v532, 0.70710677
          %v597 = vmul.f32 %v537, 0.70710677
          %v598 = vmul.f32 %v540, 0.70710677
          %v599 = vmul.f32 %v545, 0.70710677
          %v600 = vmul.f32 %v548, 0.70710677
          %v601 = vmul.f32 %v553, 0.70710677
          %v602 = vmul.f32 %v556, 0.70710677
          %v603 = vmul.f32 %v561, 0.70710677
          %v604 = vmul.f32 %v564, 0.70710677
          %v605 = vmul.f32 %v569, 0.70710677
          %v606 = vmul.f32 %v572, 0.70710677
          %v607 = verf.f32.pop %v591
          %v608 = verf.f32.pop %v592
          %v609 = verf.f32.pop %v593
          %v610 = verf.f32.pop %v594
          %v611 = verf.f32.pop %v595
          %v612 = verf.f32.pop %v596
          %v613 = verf.f32.pop %v597
          %v614 = verf.f32.pop %v598
          %v615 = verf.f32.pop %v599
          %v616 = verf.f32.pop %v600
          %v617 = verf.f32.pop %v601
          %v618 = verf.f32.pop %v602
          %v619 = verf.f32.pop %v603
          %v620 = verf.f32.pop %v604
          %v621 = verf.f32.pop %v605
          %v622 = verf.f32.pop %v606
          %v623 = vadd.f32 %v607, 1.0
          %v624 = vadd.f32 %v608, 1.0
          %v625 = vadd.f32 %v609, 1.0
          %v626 = vadd.f32 %v610, 1.0
          %v627 = vadd.f32 %v611, 1.0
          %v628 = vadd.f32 %v612, 1.0
          %v629 = vadd.f32 %v613, 1.0
          %v630 = vadd.f32 %v614, 1.0
          %v631 = vadd.f32 %v615, 1.0
          %v632 = vadd.f32 %v616, 1.0
          %v633 = vadd.f32 %v617, 1.0
          %v634 = vadd.f32 %v618, 1.0
          %v635 = vadd.f32 %v619, 1.0
          %v636 = vadd.f32 %v620, 1.0
          %v637 = vadd.f32 %v621, 1.0
          %v638 = vadd.f32 %v622, 1.0
          %v639 = vmul.f32 %v575, %v623
          %v640 = vmul.f32 %v576, %v624
          %v641 = vmul.f32 %v577, %v625
          %v642 = vmul.f32 %v578, %v626
          %v643 = vmul.f32 %v579, %v627
          %v644 = vmul.f32 %v580, %v628
          %v645 = vmul.f32 %v581, %v629
          %v646 = vmul.f32 %v582, %v630
          %v647 = vmul.f32 %v583, %v631
          %v648 = vmul.f32 %v584, %v632
          %v649 = vmul.f32 %v585, %v633
          %v650 = vmul.f32 %v586, %v634
          %v651 = vmul.f32 %v587, %v635
          %v652 = vmul.f32 %v588, %v636
          %v653 = vmul.f32 %v589, %v637
          %v654 = vmul.f32 %v590, %v638
          %655 = vadd.xlane.f32.xlu0 %v639
          %v656 = vpop.xlane.xlu0 %655
          %657 = vadd.xlane.f32.xlu0 %v640
          %v658 = vpop.xlane.xlu0 %657
          %659 = vadd.xlane.f32.xlu0 %v641
          %v660 = vpop.xlane.xlu0 %659
          %661 = vadd.xlane.f32.xlu0 %v642
          %v662 = vpop.xlane.xlu0 %661
          %663 = vadd.xlane.f32.xlu0 %v643
          %v664 = vpop.xlane.xlu0 %663
          %665 = vadd.xlane.f32.xlu0 %v644
          %v666 = vpop.xlane.xlu0 %665
          %667 = vadd.xlane.f32.xlu0 %v645
          %v668 = vpop.xlane.xlu0 %667
          %669 = vadd.xlane.f32.xlu0 %v646
          %v670 = vpop.xlane.xlu0 %669
          %671 = vadd.xlane.f32.xlu0 %v647
          %v672 = vpop.xlane.xlu0 %671
          %673 = vadd.xlane.f32.xlu0 %v648
          %v674 = vpop.xlane.xlu0 %673
          %675 = vadd.xlane.f32.xlu0 %v649
          %v676 = vpop.xlane.xlu0 %675
          %677 = vadd.xlane.f32.xlu0 %v650
          %v678 = vpop.xlane.xlu0 %677
          %679 = vadd.xlane.f32.xlu0 %v651
          %v680 = vpop.xlane.xlu0 %679
          %681 = vadd.xlane.f32.xlu0 %v652
          %v682 = vpop.xlane.xlu0 %681
          %683 = vadd.xlane.f32.xlu0 %v653
          %v684 = vpop.xlane.xlu0 %683
          %685 = vadd.xlane.f32.xlu0 %v654
          %v686 = vpop.xlane.xlu0 %685
          %v687 = vrcp.pop 128.0
          %v688 = vmul.f32 %v656, %v687
          %v689 = vmul.f32 %v658, %v687
          %v690 = vmul.f32 %v660, %v687
          %v691 = vmul.f32 %v662, %v687
          %v692 = vmul.f32 %v664, %v687
          %v693 = vmul.f32 %v666, %v687
          %v694 = vmul.f32 %v668, %v687
          %v695 = vmul.f32 %v670, %v687
          %v696 = vmul.f32 %v672, %v687
          %v697 = vmul.f32 %v674, %v687
          %v698 = vmul.f32 %v676, %v687
          %v699 = vmul.f32 %v678, %v687
          %v700 = vmul.f32 %v680, %v687
          %v701 = vmul.f32 %v682, %v687
          %v702 = vmul.f32 %v684, %v687
          %v703 = vmul.f32 %v686, %v687
          %v704 = vsub.f32 %v639, %v688
          %v705 = vsub.f32 %v640, %v689
          %v706 = vsub.f32 %v641, %v690
          %v707 = vsub.f32 %v642, %v691
          %v708 = vsub.f32 %v643, %v692
          %v709 = vsub.f32 %v644, %v693
          %v710 = vsub.f32 %v645, %v694
          %v711 = vsub.f32 %v646, %v695
          %v712 = vsub.f32 %v647, %v696
          %v713 = vsub.f32 %v648, %v697
          %v714 = vsub.f32 %v649, %v698
          %v715 = vsub.f32 %v650, %v699
          %v716 = vsub.f32 %v651, %v700
          %v717 = vsub.f32 %v652, %v701
          %v718 = vsub.f32 %v653, %v702
          %v719 = vsub.f32 %v654, %v703
          %v720 = vmul.f32 %v704, %v704
          %v721 = vmul.f32 %v705, %v705
          %v722 = vmul.f32 %v706, %v706
          %v723 = vmul.f32 %v707, %v707
          %v724 = vmul.f32 %v708, %v708
          %v725 = vmul.f32 %v709, %v709
          %v726 = vmul.f32 %v710, %v710
          %v727 = vmul.f32 %v711, %v711
          %v728 = vmul.f32 %v712, %v712
          %v729 = vmul.f32 %v713, %v713
          %v730 = vmul.f32 %v714, %v714
          %v731 = vmul.f32 %v715, %v715
          %v732 = vmul.f32 %v716, %v716
          %v733 = vmul.f32 %v717, %v717
          %v734 = vmul.f32 %v718, %v718
          %v735 = vmul.f32 %v719, %v719
          %736 = vadd.xlane.f32.xlu0 %v720
          %v737 = vpop.xlane.xlu0 %736
          %738 = vadd.xlane.f32.xlu0 %v721
          %v739 = vpop.xlane.xlu0 %738
          %740 = vadd.xlane.f32.xlu0 %v722
          %v741 = vpop.xlane.xlu0 %740
          %742 = vadd.xlane.f32.xlu0 %v723
          %v743 = vpop.xlane.xlu0 %742
          %744 = vadd.xlane.f32.xlu0 %v724
          %v745 = vpop.xlane.xlu0 %744
          %746 = vadd.xlane.f32.xlu0 %v725
          %v747 = vpop.xlane.xlu0 %746
          %748 = vadd.xlane.f32.xlu0 %v726
          %v749 = vpop.xlane.xlu0 %748
          %750 = vadd.xlane.f32.xlu0 %v727
          %v751 = vpop.xlane.xlu0 %750
          %752 = vadd.xlane.f32.xlu0 %v728
          %v753 = vpop.xlane.xlu0 %752
          %754 = vadd.xlane.f32.xlu0 %v729
          %v755 = vpop.xlane.xlu0 %754
          %756 = vadd.xlane.f32.xlu0 %v730
          %v757 = vpop.xlane.xlu0 %756
          %758 = vadd.xlane.f32.xlu0 %v731
          %v759 = vpop.xlane.xlu0 %758
          %760 = vadd.xlane.f32.xlu0 %v732
          %v761 = vpop.xlane.xlu0 %760
          %762 = vadd.xlane.f32.xlu0 %v733
          %v763 = vpop.xlane.xlu0 %762
          %764 = vadd.xlane.f32.xlu0 %v734
          %v765 = vpop.xlane.xlu0 %764
          %766 = vadd.xlane.f32.xlu0 %v735
          %v767 = vpop.xlane.xlu0 %766
          %v768 = vmul.f32 %v737, %v687
          %v769 = vmul.f32 %v739, %v687
          %v770 = vmul.f32 %v741, %v687
          %v771 = vmul.f32 %v743, %v687
          %v772 = vmul.f32 %v745, %v687
          %v773 = vmul.f32 %v747, %v687
          %v774 = vmul.f32 %v749, %v687
          %v775 = vmul.f32 %v751, %v687
          %v776 = vmul.f32 %v753, %v687
          %v777 = vmul.f32 %v755, %v687
          %v778 = vmul.f32 %v757, %v687
          %v779 = vmul.f32 %v759, %v687
          %v780 = vmul.f32 %v761, %v687
          %v781 = vmul.f32 %v763, %v687
          %v782 = vmul.f32 %v765, %v687
          %v783 = vmul.f32 %v767, %v687
          %v784 = vadd.f32 %v768, 1e-12
          %v785 = vadd.f32 %v769, 1e-12
          %v786 = vadd.f32 %v770, 1e-12
          %v787 = vadd.f32 %v771, 1e-12
          %v788 = vadd.f32 %v772, 1e-12
          %v789 = vadd.f32 %v773, 1e-12
          %v790 = vadd.f32 %v774, 1e-12
          %v791 = vadd.f32 %v775, 1e-12
          %v792 = vadd.f32 %v776, 1e-12
          %v793 = vadd.f32 %v777, 1e-12
          %v794 = vadd.f32 %v778, 1e-12
          %v795 = vadd.f32 %v779, 1e-12
          %v796 = vadd.f32 %v780, 1e-12
          %v797 = vadd.f32 %v781, 1e-12
          %v798 = vadd.f32 %v782, 1e-12
          %v799 = vadd.f32 %v783, 1e-12
          %v800 = vrsqrt.pop %v784
          %v801 = vrsqrt.pop %v785
          %v802 = vrsqrt.pop %v786
          %v803 = vrsqrt.pop %v787
          %v804 = vrsqrt.pop %v788
          %v805 = vrsqrt.pop %v789
          %v806 = vrsqrt.pop %v790
          %v807 = vrsqrt.pop %v791
          %v808 = vrsqrt.pop %v792
          %v809 = vrsqrt.pop %v793
          %v810 = vrsqrt.pop %v794
          %v811 = vrsqrt.pop %v795
          %v812 = vrsqrt.pop %v796
          %v813 = vrsqrt.pop %v797
          %v814 = vrsqrt.pop %v798
          %v815 = vrsqrt.pop %v799
          %v816 = vmul.f32 %v704, %v800
          %v817 = vmul.f32 %v705, %v801
          %v818 = vmul.f32 %v706, %v802
          %v819 = vmul.f32 %v707, %v803
          %v820 = vmul.f32 %v708, %v804
          %v821 = vmul.f32 %v709, %v805
          %v822 = vmul.f32 %v710, %v806
          %v823 = vmul.f32 %v711, %v807
          %v824 = vmul.f32 %v712, %v808
          %v825 = vmul.f32 %v713, %v809
          %v826 = vmul.f32 %v714, %v810
          %v827 = vmul.f32 %v715, %v811
          %v828 = vmul.f32 %v716, %v812
          %v829 = vmul.f32 %v717, %v813
          %v830 = vmul.f32 %v718, %v814
          %v831 = vmul.f32 %v719, %v815
          %v832 = vld [vmem:[%s3] sm:$0x1]
          %v834 = vlaneseq
          %v835 = vshrl.u32 %v834, 7
          %v836 = vsub.s32 0, %v835
          %v837 = vrot.slane %v832, %v836
          %v839 = vmul.f32 %v816, %v837
          %v840 = vmul.f32 %v817, %v837
          %v841 = vmul.f32 %v818, %v837
          %v842 = vmul.f32 %v819, %v837
          %v843 = vmul.f32 %v820, %v837
          %v844 = vmul.f32 %v821, %v837
          %v845 = vmul.f32 %v822, %v837
          %v846 = vmul.f32 %v823, %v837
          %v847 = vmul.f32 %v824, %v837
          %v848 = vmul.f32 %v825, %v837
          %v849 = vmul.f32 %v826, %v837
          %v850 = vmul.f32 %v827, %v837
          %v851 = vmul.f32 %v828, %v837
          %v852 = vmul.f32 %v829, %v837
          %v853 = vmul.f32 %v830, %v837
          %v854 = vmul.f32 %v831, %v837
          %v855 = vld [vmem:[%s4] sm:$0x1]
          %v857 = vlaneseq
          %v858 = vshrl.u32 %v857, 7
          %v859 = vsub.s32 0, %v858
          %v860 = vrot.slane %v855, %v859
          %v862 = vadd.f32 %v839, %v860
          %v863 = vadd.f32 %v840, %v860
          %v864 = vadd.f32 %v841, %v860
          %v865 = vadd.f32 %v842, %v860
          %v866 = vadd.f32 %v843, %v860
          %v867 = vadd.f32 %v844, %v860
          %v868 = vadd.f32 %v845, %v860
          %v869 = vadd.f32 %v846, %v860
          %v870 = vadd.f32 %v847, %v860
          %v871 = vadd.f32 %v848, %v860
          %v872 = vadd.f32 %v849, %v860
          %v873 = vadd.f32 %v850, %v860
          %v874 = vadd.f32 %v851, %v860
          %v875 = vadd.f32 %v852, %v860
          %v876 = vadd.f32 %v853, %v860
          %v877 = vadd.f32 %v854, %v860
          %v878 = vpack.c.bf16 %v863, %v862
          %v879 = vpack.c.bf16 %v865, %v864
          %v880 = vpack.c.bf16 %v867, %v866
          %v881 = vpack.c.bf16 %v869, %v868
          %v882 = vpack.c.bf16 %v871, %v870
          %v883 = vpack.c.bf16 %v873, %v872
          %v884 = vpack.c.bf16 %v875, %v874
          %v885 = vpack.c.bf16 %v877, %v876
          %886 = vst [vmem:[#allocation2] sm:$0xff] %v878
          %887 = vst [vmem:[#allocation2 + $0x8] sm:$0xff] %v879
          %888 = vst [vmem:[#allocation2 + $0x10] sm:$0xff] %v880
          %889 = vst [vmem:[#allocation2 + $0x18] sm:$0xff] %v881
          %890 = vst [vmem:[#allocation2 + $0x20] sm:$0xff] %v882
          %891 = vst [vmem:[#allocation2 + $0x28] sm:$0xff] %v883
          %892 = vst [vmem:[#allocation2 + $0x30] sm:$0xff] %v884
          %893 = vst [vmem:[#allocation2 + $0x38] sm:$0xff] %v885
        $region64: #{tpu_custom_call.1} parent=47 // pred_fallthru
          _
        %v894 = vld [vmem:[#allocation2] sm:$0xff]
        %v895 = vld [vmem:[#allocation2 + $0x8] sm:$0xff]
        %v896 = vld [vmem:[#allocation2 + $0x10] sm:$0xff]
        %v897 = vld [vmem:[#allocation2 + $0x18] sm:$0xff]
        %v898 = vld [vmem:[#allocation2 + $0x20] sm:$0xff]
        %v899 = vld [vmem:[#allocation2 + $0x28] sm:$0xff]
        %v900 = vld [vmem:[#allocation2 + $0x30] sm:$0xff]
        %v901 = vld [vmem:[#allocation2 + $0x38] sm:$0xff]
        %v902 = vld [vmem:[%s334] sm:$0xf]
        %v903 = vld [vmem:[%s334 + $0x4] sm:$0xf]
        %v904 = vld [vmem:[%s334 + $0x8] sm:$0xf]
        %v905 = vld [vmem:[%s334 + $0xc] sm:$0xf]
        %v906 = vld [vmem:[%s334 + $0x10] sm:$0xf]
        %v907 = vld [vmem:[%s334 + $0x14] sm:$0xf]
        %v908 = vld [vmem:[%s334 + $0x18] sm:$0xf]
        %v909 = vld [vmem:[%s334 + $0x1c] sm:$0xf]
        %v910 = vld [vmem:[%s334 + $0x20] sm:$0xf]
        %v911 = vld [vmem:[%s334 + $0x24] sm:$0xf]
        %v912 = vld [vmem:[%s334 + $0x28] sm:$0xf]
        %v913 = vld [vmem:[%s334 + $0x2c] sm:$0xf]
        %v914 = vld [vmem:[%s334 + $0x30] sm:$0xf]
        %v915 = vld [vmem:[%s334 + $0x34] sm:$0xf]
        %v916 = vld [vmem:[%s334 + $0x38] sm:$0xf]
        %v917 = vld [vmem:[%s334 + $0x3c] sm:$0xf]
        %v918 = vld [vmem:[%s376] sm:$0x1]
        %v920 = vlaneseq
        %v921 = vshrl.u32 %v920, 7
        %v922 = vsub.s32 0, %v921
        %v923 = vrot.slane %v918, %v922
        %v941 = vunpack.c.l.b16 %v902
        %v942 = vunpack.c.l.b16 %v903
        %v943 = vunpack.c.l.b16 %v904
        %v944 = vunpack.c.l.b16 %v905
        %v945 = vunpack.c.l.b16 %v906
        %v946 = vunpack.c.l.b16 %v907
        %v947 = vunpack.c.l.b16 %v908
        %v948 = vunpack.c.l.b16 %v909
        %v949 = vunpack.c.l.b16 %v910
        %v950 = vunpack.c.l.b16 %v911
        %v951 = vunpack.c.l.b16 %v912
        %v952 = vunpack.c.l.b16 %v913
        %v953 = vunpack.c.l.b16 %v914
        %v954 = vunpack.c.l.b16 %v915
        %v955 = vunpack.c.l.b16 %v916
        %v956 = vunpack.c.l.b16 %v917
        %v957 = vpack.c.b16 %v942, %v941
        %v958 = vpack.c.b16 %v944, %v943
        %v959 = vpack.c.b16 %v946, %v945
        %v960 = vpack.c.b16 %v948, %v947
        %v961 = vpack.c.b16 %v950, %v949
        %v962 = vpack.c.b16 %v952, %v951
        %v963 = vpack.c.b16 %v954, %v953
        %v964 = vpack.c.b16 %v956, %v955
        %973 = vmatprep.subr.bf16.mxu0 0
        %974 = vmatpush1.bf16.msra.mxu0 %v957
        %975 = vmatprep.subr.bf16.mxu0 0
        %976 = vmatpush1.bf16.msra.mxu0 %v958
        %977 = vmatprep.subr.bf16.mxu0 0
        %978 = vmatpush1.bf16.msra.mxu0 %v959
        %979 = vmatprep.subr.bf16.mxu0 0
        %980 = vmatpush1.bf16.msra.mxu0 %v960
        %981 = vmatprep.subr.bf16.mxu0 0
        %982 = vmatpush1.bf16.msra.mxu0 %v961
        %983 = vmatprep.subr.bf16.mxu0 0
        %984 = vmatpush1.bf16.msra.mxu0 %v962
        %985 = vmatprep.subr.bf16.mxu0 0
        %986 = vmatpush1.bf16.msra.mxu0 %v963
        %987 = vmatprep.subr.bf16.mxu0 0
        %988 = vmatpush1.bf16.msra.mxu0 %v964
        %989 = vmatprep.subr.bf16.mxu0 0
        %990 = vmatpush1.bf16.msra.mxu0 0
        %991 = vmatprep.subr.bf16.mxu0 0
        %992 = vmatpush1.bf16.msra.mxu0 0
        %993 = vmatprep.subr.bf16.mxu0 0
        %994 = vmatpush1.bf16.msra.mxu0 0
        %995 = vmatprep.subr.bf16.mxu0 0
        %996 = vmatpush1.bf16.msra.mxu0 0
        %997 = vmatprep.subr.bf16.mxu0 0
        %998 = vmatpush1.bf16.msra.mxu0 0
        %999 = vmatprep.subr.bf16.mxu0 0
        %1000 = vmatpush1.bf16.msra.mxu0 0
        %1001 = vmatprep.subr.bf16.mxu0 0
        %1002 = vmatpush1.bf16.msra.mxu0 0
        %1003 = vmatprep.subr.bf16.mxu0 0
        %1004 = vmatpush1.bf16.msra.mxu0 0
        %1005 = vmatprep.mubr.bf16.mxu0 0
        %1006 = vmatmul.mubr.bf16.gmra.mrb[0].mxu0 %v894
        %v1007 = vpop.f32.mrb[0].mxu0
        %v1008 = vadd.f32 %v923, %v1007
        %v1009 = vpop.f32.mrb[0].mxu0
        %v1010 = vpop.f32.mrb[0].mxu0
        %v1011 = vadd.f32 %v923, %v1010
        %v1012 = vpop.f32.mrb[0].mxu0
        %1013 = vmatprep.mubr.bf16.mxu0 0
        %1014 = vmatmul.mubr.bf16.gmra.mrb[0].mxu0 %v895
        %v1015 = vpop.f32.mrb[0].mxu0
        %v1016 = vadd.f32 %v923, %v1015
        %v1017 = vpop.f32.mrb[0].mxu0
        %v1018 = vpop.f32.mrb[0].mxu0
        %v1019 = vadd.f32 %v923, %v1018
        %v1020 = vpop.f32.mrb[0].mxu0
        %1021 = vmatprep.mubr.bf16.mxu0 0
        %1022 = vmatmul.mubr.bf16.gmra.mrb[0].mxu0 %v896
        %v1023 = vpop.f32.mrb[0].mxu0
        %v1024 = vadd.f32 %v923, %v1023
        %v1025 = vpop.f32.mrb[0].mxu0
        %v1026 = vpop.f32.mrb[0].mxu0
        %v1027 = vadd.f32 %v923, %v1026
        %v1028 = vpop.f32.mrb[0].mxu0
        %1029 = vmatprep.mubr.bf16.mxu0 0
        %1030 = vmatmul.mubr.bf16.gmra.mrb[0].mxu0 %v897
        %v1031 = vpop.f32.mrb[0].mxu0
        %v1032 = vadd.f32 %v923, %v1031
        %v1033 = vpop.f32.mrb[0].mxu0
        %v1034 = vpop.f32.mrb[0].mxu0
        %v1035 = vadd.f32 %v923, %v1034
        %v1036 = vpop.f32.mrb[0].mxu0
        %1037 = vmatprep.mubr.bf16.mxu0 0
        %1038 = vmatmul.mubr.bf16.gmra.mrb[0].mxu0 %v898
        %v1039 = vpop.f32.mrb[0].mxu0
        %v1040 = vadd.f32 %v923, %v1039
        %v1041 = vpop.f32.mrb[0].mxu0
        %v1042 = vpop.f32.mrb[0].mxu0
        %v1043 = vadd.f32 %v923, %v1042
        %v1044 = vpop.f32.mrb[0].mxu0
        %1045 = vmatprep.mubr.bf16.mxu0 0
        %1046 = vmatmul.mubr.bf16.gmra.mrb[0].mxu0 %v899
        %v1047 = vpop.f32.mrb[0].mxu0
        %v1048 = vadd.f32 %v923, %v1047
        %v1049 = vpop.f32.mrb[0].mxu0
        %v1050 = vpop.f32.mrb[0].mxu0
        %v1051 = vadd.f32 %v923, %v1050
        %v1052 = vpop.f32.mrb[0].mxu0
        %1053 = vmatprep.mubr.bf16.mxu0 0
        %1054 = vmatmul.mubr.bf16.gmra.mrb[0].mxu0 %v900
        %v1055 = vpop.f32.mrb[0].mxu0
        %v1056 = vadd.f32 %v923, %v1055
        %v1057 = vpop.f32.mrb[0].mxu0
        %v1058 = vpop.f32.mrb[0].mxu0
        %v1059 = vadd.f32 %v923, %v1058
        %v1060 = vpop.f32.mrb[0].mxu0
        %1061 = vmatprep.mubr.bf16.mxu0 0
        %1062 = vmatmul.mubr.bf16.gmra.mrb[0].mxu0 %v901
        %v1063 = vpop.f32.mrb[0].mxu0
        %v1064 = vadd.f32 %v923, %v1063
        %v1065 = vpop.f32.mrb[0].mxu0
        %v1066 = vpop.f32.mrb[0].mxu0
        %v1067 = vadd.f32 %v923, %v1066
        %v1068 = vpop.f32.mrb[0].mxu0
        %1069 = vdwg.mxu0
        %1070 = vst [vmem:[%s372] sm:$0xff] %v1008
        %1071 = vst [vmem:[%s372 + $0x8] sm:$0xff] %v1011
        %1072 = vst [vmem:[%s372 + $0x10] sm:$0xff] %v1016
        %1073 = vst [vmem:[%s372 + $0x18] sm:$0xff] %v1019
        %1074 = vst [vmem:[%s372 + $0x20] sm:$0xff] %v1024
        %1075 = vst [vmem:[%s372 + $0x28] sm:$0xff] %v1027
        %1076 = vst [vmem:[%s372 + $0x30] sm:$0xff] %v1032
        %1077 = vst [vmem:[%s372 + $0x38] sm:$0xff] %v1035
        %1078 = vst [vmem:[%s372 + $0x40] sm:$0xff] %v1040
        %1079 = vst [vmem:[%s372 + $0x48] sm:$0xff] %v1043
        %1080 = vst [vmem:[%s372 + $0x50] sm:$0xff] %v1048
        %1081 = vst [vmem:[%s372 + $0x58] sm:$0xff] %v1051
        %1082 = vst [vmem:[%s372 + $0x60] sm:$0xff] %v1056
        %1083 = vst [vmem:[%s372 + $0x68] sm:$0xff] %v1059
        %1084 = vst [vmem:[%s372 + $0x70] sm:$0xff] %v1064
        %1085 = vst [vmem:[%s372 + $0x78] sm:$0xff] %v1067
        %s1086 = sand.u32 %s209, 1
        %s1087 = scalar_lea.sflag [#allocation5], %s1086
        %s1088 = sand.u32 %s209, 1
        %s1089 = smul.addr %s1088, 128
        %s1090 = scalar_lea.vmem [#allocation9], %s1089
        // Predicated region
        $region65: #{tpu_custom_call.1} parent=47 // pred_check
          %p1091 = pneg %p219
        $region66: #{tpu_custom_call.1} parent=47 // pred_check_branch
          %1093 = sbr.rel (%p1091) target = $region68
        $region67: #{tpu_custom_call.1} parent=47 // pred_region
          %s1094 = smul.u32 16, %s29
          %s1096 = ssub.s32 2048, 2048
          %1097 = vsyncadd %s1087, %s1096
          %s1098 = smul.addr %s1094, 2
          %s1099 = sadd.s32 %s30, %s1098
          %s1100 = smul.addr %s1099, 128
          %s1101 = scalar_lea.hbm %s7, %s1100
          %s1102 = sshll.u32 %s1090, 4
          %s1103 = int_to_ptr.vmem [resolvable:$true] %s1102
          %1108 = dma.vmem_to_hbm [thread:$0]  %s1103, 2048, %s1101, %s1087, 128, 256, 8
        $region68: #{tpu_custom_call.1} parent=47 // pred_fallthru
          _
      $region48: #{tpu_custom_call.1} parent=5 // pred_fallthru
        _
      %p1109 = scmp.le.s32.totalorder 2, %s20
      // Predicated region
      $region69: #{tpu_custom_call.1} parent=5 // pred_check
        %p1110 = pneg %p1109
      $region70: #{tpu_custom_call.1} parent=5 // pred_check_branch
        %1112 = sbr.rel (%p1110) target = $region72
      $region71: #{tpu_custom_call.1} parent=5 // pred_region
        %s1113 = ssub.s32 %s20, 2
        // Predicated region
        $region73: #{tpu_custom_call.1} parent=71 // pred_check
          %p1114 = pneg %p225
        $region74: #{tpu_custom_call.1} parent=71 // pred_check_branch
          %1116 = sbr.rel (%p1114) target = $region76
        $region75: #{tpu_custom_call.1} parent=71 // pred_region
          %s1117 = sand.u32 %s210, 1
          %s1118 = scalar_lea.sflag [#allocation5], %s1117
          %s1119 = sand.u32 %s210, 1
          %s1120 = smul.addr %s1119, 128
          %s1121 = scalar_lea.vmem [#allocation9], %s1120
          %1122 = dma.done %s1118, 2048
        $region76: #{tpu_custom_call.1} parent=71 // pred_fallthru
          _
      $region72: #{tpu_custom_call.1} parent=5 // pred_fallthru
        _
    $region6: #{tpu_custom_call.1} parent=1 // loop_footer
      %s24 = sadd.s32 1, %s20
    $region7: #{tpu_custom_call.1} parent=1 // loop_footer_branch
      %19 = sbr.rel target = $region3
    $region8: #{tpu_custom_call.1} parent=1 // loop_exit
      _
    %1123 = vsyncpa [#allocation4], 1
    %s1124 = scalar_lea.sflag [#allocation4], 1
    %1125 = vsyncpa %s1124, 1
    %1126 = vsyncpa [#allocation7], 1
    %1127 = vsyncpa [#allocation5], 1
    %s1128 = scalar_lea.sflag [#allocation5], 1
    %1129 = vsyncpa %s1128, 1

</llo_original>
